<compile_context>
chip_gen: v5e
topology: v5e:2x2
jax: 0.10.0
libtpu: 0.0.40
codegen_flags: <defaults>
</compile_context>

<pallas_src>
import functools

import jax
import jax.numpy as jnp
from jax.experimental import pallas as pl
from jax.experimental.pallas import tpu as pltpu

HIDDEN = 128
_NEG_BIG = -1e30  # bias for padded softmax columns -> exp underflows to 0 (f32 path)


def gating_kernel(x_ref, w1_ref, b1_ref, w2_ref, b2_ref, out_ref):
    # x: [Bt, D] f32 (cast to bf16 in-kernel), w1: [D, H] bf16, b1: [1, H] f32,
    # w2: [H, N_pad] bf16, b2: [1, N_pad] f32, out: [Bt, N_pad] out_dtype.
    x = x_ref[...].astype(jnp.bfloat16)                       # in-kernel cast (VPU)
    h = jnp.dot(x, w1_ref[...], preferred_element_type=jnp.float32) + b1_ref[...]
    h = jnp.maximum(h, 0.0)                                   # ReLU (f32)
    logits = (
        jnp.dot(h.astype(w2_ref.dtype), w2_ref[...],
                preferred_element_type=jnp.float32)
        + b2_ref[...]
    )
    # numerically-stable softmax along the last axis
    m = jnp.max(logits, axis=-1, keepdims=True)
    e = jnp.exp(logits - m)
    s = jnp.sum(e, axis=-1, keepdims=True)
    out_ref[...] = (e * pl.reciprocal(s)).astype(out_ref.dtype)  # exact reciprocal


def _round_up(x, m):
    return ((x + m - 1) // m) * m


def prepare_gating_params(w1, b1, w2, b2):
    """One-time weight prep: bf16 cast + lane-dense (multiple-of-128) padding.

    Call this ONCE when the gating params are created/updated; per-forward-call
    re-prep would re-read/write all weights in HBM every step.
    """
    D, H = w1.shape
    N = w2.shape[1]
    N_pad = _round_up(max(N, 128), 128)
    w1_bf = jnp.asarray(w1, jnp.float32).astype(jnp.bfloat16)
    w2_bf = jnp.pad(jnp.asarray(w2, jnp.float32),
                    ((0, 0), (0, N_pad - N))).astype(jnp.bfloat16)
    b1_f = jnp.asarray(b1, jnp.float32).reshape(1, H)
    b2_f = jnp.pad(jnp.asarray(b2, jnp.float32).reshape(1, N),
                   ((0, 0), (0, N_pad - N)), constant_values=_NEG_BIG)
    return w1_bf, b1_f, w2_bf, b2_f


@functools.partial(
    jax.jit,
    static_argnames=("num_loras", "block_b", "return_padded", "out_dtype"))
def gating_network(task_features, w1_bf, b1, w2_bf, b2, *, num_loras,
                   block_b=2048, return_padded=False, out_dtype=jnp.bfloat16):
    """task_features: [B, D] f32.  Weights must come from prepare_gating_params."""
    B, D = task_features.shape
    H = w1_bf.shape[1]
    N_pad = w2_bf.shape[1]
    out_bytes = jnp.dtype(out_dtype).itemsize

    # ---- batch tile: multiple of 16 (bf16 sublane packing), sized from a
    # conservative VMEM budget so it fits v5e's 16 MiB default scoped VMEM
    # and v7x's 64 MiB physical VMEM even when N_pad is large.
    per_row_bytes = (2 * 4 * D              # f32 x double-buffer
                     + 2 * D                # in-kernel bf16 copy of x
                     + 2 * out_bytes * N_pad  # output double-buffer
                     + 4 * H                # h (f32)
                     + 8 * N_pad)           # logits + e (f32)
    budget = 12 * 1024 * 1024
    bt = min(block_b, max(16, budget // per_row_bytes), _round_up(B, 16))
    Bt = max(16, (bt // 16) * 16)

    B_pad = _round_up(B, Bt)
    x = task_features
    if B_pad != B:
        x = jnp.pad(x, ((0, B_pad - B), (0, 0)))

    grid = (B_pad // Bt,)
    cost = pl.CostEstimate(
        flops=2 * B_pad * (D * H + H * N_pad),
        transcendentals=B_pad * (N_pad + 1),
        bytes_accessed=(B_pad * D * 4 + w1_bf.size * 2 + w2_bf.size * 2
                        + b1.size * 4 + b2.size * 4 + B_pad * N_pad * out_bytes),
    )

    out_padded = pl.pallas_call(
        gating_kernel,
        out_shape=jax.ShapeDtypeStruct((B_pad, N_pad), out_dtype),
        grid=grid,
        in_specs=[
            pl.BlockSpec((Bt, D), lambda i: (i, 0)),       # x: tiled over batch
            pl.BlockSpec((D, H), lambda i: (0, 0)),        # w1: resident
            pl.BlockSpec((1, H), lambda i: (0, 0)),        # b1: resident
            pl.BlockSpec((H, N_pad), lambda i: (0, 0)),    # w2: resident
            pl.BlockSpec((1, N_pad), lambda i: (0, 0)),    # b2: resident
        ],
        out_specs=pl.BlockSpec((Bt, N_pad), lambda i: (i, 0)),
        compiler_params=pltpu.CompilerParams(
            dimension_semantics=("parallel",),
            vmem_limit_bytes=32 * 1024 * 1024,
        ),
        cost_estimate=cost,
    )(x, w1_bf, b1, w2_bf, b2)

    if return_padded:
        # Lane-dense (B_pad, N_pad) layout; padded columns are exactly 0 after
        # softmax, so argmax / top-k / weighted-sum downstream remain correct
        # and the slice copy below is avoided entirely.
        return out_padded
    return out_padded[:B, :num_loras]


def init_params(key, input_dim, num_loras, hidden=HIDDEN):
    # Deterministic init mimicking nn.Linear default (uniform +/- 1/sqrt(fan_in)).
    k1, k2, k3, k4 = jax.random.split(key, 4)
    bound1 = 1.0 / (input_dim ** 0.5)
    bound2 = 1.0 / (hidden ** 0.5)
    w1 = jax.random.uniform(k1, (input_dim, hidden), jnp.float32, -bound1, bound1)
    b1 = jax.random.uniform(k2, (1, hidden), jnp.float32, -bound1, bound1)
    w2 = jax.random.uniform(k3, (hidden, num_loras), jnp.float32, -bound2, bound2)
    b2 = jax.random.uniform(k4, (1, num_loras), jnp.float32, -bound2, bound2)
    return w1, b1, w2, b2


def reference_bf16(x, w1, b1, w2, b2):
    # Same compute path (bf16 matmul operands, f32 accumulation) in plain JAX.
    xb = x.astype(jnp.bfloat16)
    w1b = w1.astype(jnp.bfloat16)
    w2b = w2.astype(jnp.bfloat16)
    h = jnp.maximum(
        jnp.dot(xb, w1b, preferred_element_type=jnp.float32) + b1, 0.0)
    logits = jnp.dot(h.astype(jnp.bfloat16), w2b,
                     preferred_element_type=jnp.float32) + b2
    return jax.nn.softmax(logits, axis=-1)


if __name__ == "__main__":
    B, D, N = 8, 32, 8   # batch, input_dim, num_loras
    key = jax.random.PRNGKey(0)
    kx, kp = jax.random.split(key)
    x = jax.random.normal(kx, (B, D), jnp.float32)
    w1, b1, w2, b2 = init_params(kp, D, N)

    # One-time weight preparation (hoisted out of the forward path).
    w1_bf, b1_f, w2_bf, b2_f = prepare_gating_params(w1, b1, w2, b2)

    out = gating_network(x, w1_bf, b1_f, w2_bf, b2_f, num_loras=N)
    out = jax.block_until_ready(out)

    assert out.shape == (B, N)

    # Compare against a matching bf16-path JAX reference.  Kernel output is
    # bf16 (per perf review), so allow ~bf16 quantization of the probabilities.
    ref = reference_bf16(x, w1, b1, w2, b2)
    out_f32 = out.astype(jnp.float32)
    assert jnp.allclose(out_f32, ref, atol=5e-3), "mismatch vs JAX reference"
    # softmax rows sum to ~1 (exact reciprocal; only bf16 output quantization)
    assert jnp.allclose(jnp.sum(out_f32, axis=-1), 1.0, atol=1.5e-2), "row sums"

    print("KERNEL_OK")
</pallas_src>

<mosaic_0001>
module attributes {stable_mosaic.version = 11 : i64} {
  func.func @gating_kernel(%arg0: i32, %arg1: memref<16x32xf32, #tpu.memory_space<vmem>>, %arg2: memref<32x128xbf16, #tpu.memory_space<vmem>>, %arg3: memref<1x128xf32, #tpu.memory_space<vmem>>, %arg4: memref<128x128xbf16, #tpu.memory_space<vmem>>, %arg5: memref<1x128xf32, #tpu.memory_space<vmem>>, %arg6: memref<16x128xbf16, #tpu.memory_space<vmem>>) attributes {dimension_semantics = [#tpu.dimension_semantics<parallel>], iteration_bounds = array<i64: 1>, scalar_prefetch = 0 : i64, scratch_operands = 0 : i64, tpu.core_type = #tpu.core_type<tc>, window_params = [{transform_indices = @transform_0, window_bounds = array<i64: 16, 32>}, {pipeline_mode = #tpu.pipeline_mode<synchronous>, transform_indices = @transform_1, window_bounds = array<i64: 32, 128>}, {pipeline_mode = #tpu.pipeline_mode<synchronous>, transform_indices = @transform_2, window_bounds = array<i64: 1, 128>}, {pipeline_mode = #tpu.pipeline_mode<synchronous>, transform_indices = @transform_3, window_bounds = array<i64: 128, 128>}, {pipeline_mode = #tpu.pipeline_mode<synchronous>, transform_indices = @transform_4, window_bounds = array<i64: 1, 128>}, {transform_indices = @transform_5, window_bounds = array<i64: 16, 128>}]} {
    %c0 = arith.constant 0 : index
    %c0_0 = arith.constant 0 : index
    %0 = vector.load %arg1[%c0, %c0_0] : memref<16x32xf32, #tpu.memory_space<vmem>>, vector<16x32xf32>
    %1 = arith.truncf %0 : vector<16x32xf32> to vector<16x32xbf16>
    %c0_1 = arith.constant 0 : index
    %c0_2 = arith.constant 0 : index
    %2 = vector.load %arg2[%c0_1, %c0_2] : memref<32x128xbf16, #tpu.memory_space<vmem>>, vector<32x128xbf16>
    %cst = arith.constant dense<0.000000e+00> : vector<16x128xf32>
    %3 = tpu.matmul %1, %2, %cst {dimension_numbers = #tpu.dot_dimension_numbers<[1], [0], [0], [1], [0, 0, 1, 1], [], []>} : vector<16x32xbf16>, vector<32x128xbf16>, vector<16x128xf32> -> vector<16x128xf32>
    %c0_3 = arith.constant 0 : index
    %c0_4 = arith.constant 0 : index
    %4 = vector.load %arg3[%c0_3, %c0_4] : memref<1x128xf32, #tpu.memory_space<vmem>>, vector<1x128xf32>
    %5 = vector.broadcast %4 : vector<1x128xf32> to vector<16x128xf32>
    %6 = arith.addf %3, %5 : vector<16x128xf32>
    %cst_5 = arith.constant 0.000000e+00 : f32
    %7 = vector.broadcast %cst_5 : f32 to vector<16x128xf32>
    %8 = arith.maximumf %6, %7 : vector<16x128xf32>
    %9 = arith.truncf %8 : vector<16x128xf32> to vector<16x128xbf16>
    %c0_6 = arith.constant 0 : index
    %c0_7 = arith.constant 0 : index
    %10 = vector.load %arg4[%c0_6, %c0_7] : memref<128x128xbf16, #tpu.memory_space<vmem>>, vector<128x128xbf16>
    %cst_8 = arith.constant dense<0.000000e+00> : vector<16x128xf32>
    %11 = tpu.matmul %9, %10, %cst_8 {dimension_numbers = #tpu.dot_dimension_numbers<[1], [0], [0], [1], [0, 0, 1, 1], [], []>} : vector<16x128xbf16>, vector<128x128xbf16>, vector<16x128xf32> -> vector<16x128xf32>
    %c0_9 = arith.constant 0 : index
    %c0_10 = arith.constant 0 : index
    %12 = vector.load %arg5[%c0_9, %c0_10] : memref<1x128xf32, #tpu.memory_space<vmem>>, vector<1x128xf32>
    %13 = vector.broadcast %12 : vector<1x128xf32> to vector<16x128xf32>
    %14 = arith.addf %11, %13 : vector<16x128xf32>
    %cst_11 = arith.constant dense<0xFF800000> : vector<16xf32>
    %15 = vector.multi_reduction <maximumf>, %14, %cst_11 [1] : vector<16x128xf32> to vector<16xf32>
    %16 = vector.shape_cast %15 : vector<16xf32> to vector<16x1xf32>
    %17 = vector.broadcast %16 : vector<16x1xf32> to vector<16x128xf32>
    %18 = arith.subf %14, %17 : vector<16x128xf32>
    %19 = math.exp %18 : vector<16x128xf32>
    %cst_12 = arith.constant dense<0.000000e+00> : vector<16xf32>
    %20 = vector.multi_reduction <add>, %19, %cst_12 [1] : vector<16x128xf32> to vector<16xf32>
    %21 = vector.shape_cast %20 : vector<16xf32> to vector<16x1xf32>
    %22 = tpu.reciprocal %21 : vector<16x1xf32> -> vector<16x1xf32>
    %23 = vector.broadcast %22 : vector<16x1xf32> to vector<16x128xf32>
    %24 = arith.mulf %19, %23 : vector<16x128xf32>
    %25 = arith.truncf %24 : vector<16x128xf32> to vector<16x128xbf16>
    %c0_13 = arith.constant 0 : index
    %c0_14 = arith.constant 0 : index
    %26 = vector.load %arg6[%c0_13, %c0_14] : memref<16x128xbf16, #tpu.memory_space<vmem>>, vector<16x128xbf16>
    tpu.vector_store %arg6[%c0_13, %c0_14], %25 {strides = array<i32>} : memref<16x128xbf16, #tpu.memory_space<vmem>>, vector<16x128xbf16>,
    return
  }
  func.func @transform_0(%arg0: i32) -> (i32, i32) {
    %c0_i32 = arith.constant 0 : i32
    %c0_i32_0 = arith.constant 0 : i32
    return %arg0, %c0_i32 : i32, i32
  }
  func.func @transform_1(%arg0: i32) -> (i32, i32) {
    %c0_i32 = arith.constant 0 : i32
    %c0_i32_0 = arith.constant 0 : i32
    %c0_i32_1 = arith.constant 0 : i32
    return %c0_i32, %c0_i32_0 : i32, i32
  }
  func.func @transform_2(%arg0: i32) -> (i32, i32) {
    %c0_i32 = arith.constant 0 : i32
    %c0_i32_0 = arith.constant 0 : i32
    %c0_i32_1 = arith.constant 0 : i32
    return %c0_i32, %c0_i32_0 : i32, i32
  }
  func.func @transform_3(%arg0: i32) -> (i32, i32) {
    %c0_i32 = arith.constant 0 : i32
    %c0_i32_0 = arith.constant 0 : i32
    %c0_i32_1 = arith.constant 0 : i32
    return %c0_i32, %c0_i32_0 : i32, i32
  }
  func.func @transform_4(%arg0: i32) -> (i32, i32) {
    %c0_i32 = arith.constant 0 : i32
    %c0_i32_0 = arith.constant 0 : i32
    %c0_i32_1 = arith.constant 0 : i32
    return %c0_i32, %c0_i32_0 : i32, i32
  }
  func.func @transform_5(%arg0: i32) -> (i32, i32) {
    %c0_i32 = arith.constant 0 : i32
    %c0_i32_0 = arith.constant 0 : i32
    return %arg0, %c0_i32 : i32, i32
  }
}

</mosaic_0001>

<llo_original>
// kernel: gating_network.1
$region0: #{gating_network.1}
  #allocation0 [shape = 'u32[]', space=smem, size = 0x4, offset = 0x4, fixed_abs, tag = 'smem constant byte address 0x4 - core index']
  #allocation1 [shape = 'u32[72,128]{1,0:T(1,128)}', space=vmem, size = 0x9000, scoped, tag = 'internal scratch']
  %s0 = inlined_call_operand.vmem [shape: f32[16,32], index: 0, kind: input, shape index: {}]
  %s1 = inlined_call_operand.vmem [shape: bf16[32,128], index: 1, kind: input, shape index: {}]
  %s2 = inlined_call_operand.vmem [shape: f32[1,128], index: 2, kind: input, shape index: {}]
  %s3 = inlined_call_operand.hbm [shape: bf16[128,128], index: 3, kind: input, shape index: {}]
  %s4 = inlined_call_operand.vmem [shape: f32[1,128], index: 4, kind: input, shape index: {}]
  %s5 = inlined_call_operand.vmem [shape: bf16[16,128], index: 5, kind: output, shape index: {}]
  %s6 = sld [smem:[#allocation0]]
  $region34: #{gating_network.1} parent=0
    _
  %s8 = ssub.s32 1, %s6
  %s9 = scalar_select 0, %s8, %s6
  $region1: #{gating_network.1} parent=0
    #allocation2 [shape = 'u8[32768]{0}', space=vmem, size = 0x8000, scoped, tag = 'input window, operand 3, single buffered']
    #allocation3 [shape = 's32[1]{0}', space=sflag, size = 0x4, scoped, tag = 'scoped memory for gating_network.1']
    %10 = vsyncpa [#allocation3], 0
    // Predicated region
    $region2: #{gating_network.1} parent=1 // pred_check
      _
    $region3: #{gating_network.1} parent=1 // pred_check_branch
      %12 = sbr.rel (0) target = $region5
    $region4: #{gating_network.1} parent=1 // pred_region
      _
    $region5: #{gating_network.1} parent=1 // pred_fallthru
      _
    // Predicated region
    $region6: #{gating_network.1} parent=1 // pred_check
      _
    $region7: #{gating_network.1} parent=1 // pred_check_branch
      %14 = sbr.rel (0) target = $region9
    $region8: #{gating_network.1} parent=1 // pred_region
      _
    $region9: #{gating_network.1} parent=1 // pred_fallthru
      _
    // Predicated region
    $region10: #{gating_network.1} parent=1 // pred_check
      _
    $region11: #{gating_network.1} parent=1 // pred_check_branch
      %16 = sbr.rel (0) target = $region13
    $region12: #{gating_network.1} parent=1 // pred_region
      _
    $region13: #{gating_network.1} parent=1 // pred_fallthru
      _
    // Predicated region
    $region14: #{gating_network.1} parent=1 // pred_check
      _
    $region15: #{gating_network.1} parent=1 // pred_check_branch
      %18 = sbr.rel (0) target = $region17
    $region16: #{gating_network.1} parent=1 // pred_region
      %20 = vsyncadd [#allocation3], 0
      %s21 = sshll.u32 %s3, 4
      %s22 = int_to_ptr.hbm [resolvable:$true] %s21
      %s23 = sshll.u32 [#allocation2], 4
      %s24 = int_to_ptr.vmem [resolvable:$true] %s23
      %29 = dma.hbm_to_vmem [thread:$0]  %s22, 1024, %s24, [#allocation3], 64, 64, 4
    $region17: #{gating_network.1} parent=1 // pred_fallthru
      _
    // Predicated region
    $region18: #{gating_network.1} parent=1 // pred_check
      _
    $region19: #{gating_network.1} parent=1 // pred_check_branch
      %31 = sbr.rel (0) target = $region21
    $region20: #{gating_network.1} parent=1 // pred_region
      _
    $region21: #{gating_network.1} parent=1 // pred_fallthru
      _
    // Predicated region
    $region22: #{gating_network.1} parent=1 // pred_check
      _
    $region23: #{gating_network.1} parent=1 // pred_check_branch
      %33 = sbr.rel (0) target = $region25
    $region24: #{gating_network.1} parent=1 // pred_region
      %35 = dma.done [#allocation3], 1024
    $region25: #{gating_network.1} parent=1 // pred_fallthru
      _
    %v37 = vld [vmem:[%s0] sm:$0xff]
    %v38 = vld [vmem:[%s0 + $0x8] sm:$0xff]
    %v39 = vpack.c.bf16 %v38, %v37
    %v40 = vld [vmem:[%s1] sm:$0xf]
    %v41 = vld [vmem:[%s1 + $0x4] sm:$0xf]
    %v42 = vld [vmem:[%s1 + $0x8] sm:$0xf]
    %v43 = vld [vmem:[%s1 + $0xc] sm:$0xf]
    %v44 = vld [vmem:[%s2] sm:$0x1]
    %v46 = vperm.slane %v44, 0
    %v52 = vunpack.c.l.b16 %v40
    %v53 = vunpack.c.l.b16 %v41
    %v54 = vunpack.c.l.b16 %v42
    %v55 = vunpack.c.l.b16 %v43
    %v56 = vpack.c.b16 %v53, %v52
    %v57 = vpack.c.b16 %v55, %v54
    %vm60 = vcmask 261120
    %v62 = vsel %vm60, %v39, 0
    %64 = vmatpush.bf16.msra.mxu0 0
    %65 = vmatpush.bf16.msra.mxu0 0
    %66 = vmatpush.bf16.msra.mxu0 0
    %67 = vmatpush.bf16.msra.mxu0 0
    %68 = vmatpush.bf16.msra.mxu0 0
    %69 = vmatpush.bf16.msra.mxu0 0
    %70 = vmatpush.bf16.msra.mxu0 %v57
    %71 = vmatpush.bf16.msra.mxu0 %v56
    %72 = vmatmul.bf16.gmra.mxu0 %v62
    %v73 = vpop.f32.mrf.mxu0
    %v74 = vadd.f32 %v46, %v73
    %v75 = vpop.f32.mrf.mxu0
    %v76 = vadd.f32 %v46, %v75
    %77 = vdwg.mxu0
    %v78 = vmax.f32 %v74, 0.0
    %v79 = vmax.f32 %v76, 0.0
    %v80 = vpack.c.bf16 %v79, %v78
    %v81 = vld [vmem:[#allocation2] sm:$0xf]
    %v82 = vld [vmem:[#allocation2 + $0x4] sm:$0xf]
    %v83 = vld [vmem:[#allocation2 + $0x8] sm:$0xf]
    %v84 = vld [vmem:[#allocation2 + $0xc] sm:$0xf]
    %v85 = vld [vmem:[#allocation2 + $0x10] sm:$0xf]
    %v86 = vld [vmem:[#allocation2 + $0x14] sm:$0xf]
    %v87 = vld [vmem:[#allocation2 + $0x18] sm:$0xf]
    %v88 = vld [vmem:[#allocation2 + $0x1c] sm:$0xf]
    %v89 = vld [vmem:[#allocation2 + $0x20] sm:$0xf]
    %v90 = vld [vmem:[#allocation2 + $0x24] sm:$0xf]
    %v91 = vld [vmem:[#allocation2 + $0x28] sm:$0xf]
    %v92 = vld [vmem:[#allocation2 + $0x2c] sm:$0xf]
    %v93 = vld [vmem:[#allocation2 + $0x30] sm:$0xf]
    %v94 = vld [vmem:[#allocation2 + $0x34] sm:$0xf]
    %v95 = vld [vmem:[#allocation2 + $0x38] sm:$0xf]
    %v96 = vld [vmem:[#allocation2 + $0x3c] sm:$0xf]
    %v97 = vld [vmem:[%s4] sm:$0x1]
    %v99 = vperm.slane %v97, 0
    %v117 = vunpack.c.l.b16 %v81
    %v118 = vunpack.c.l.b16 %v82
    %v119 = vunpack.c.l.b16 %v83
    %v120 = vunpack.c.l.b16 %v84
    %v121 = vunpack.c.l.b16 %v85
    %v122 = vunpack.c.l.b16 %v86
    %v123 = vunpack.c.l.b16 %v87
    %v124 = vunpack.c.l.b16 %v88
    %v125 = vunpack.c.l.b16 %v89
    %v126 = vunpack.c.l.b16 %v90
    %v127 = vunpack.c.l.b16 %v91
    %v128 = vunpack.c.l.b16 %v92
    %v129 = vunpack.c.l.b16 %v93
    %v130 = vunpack.c.l.b16 %v94
    %v131 = vunpack.c.l.b16 %v95
    %v132 = vunpack.c.l.b16 %v96
    %v133 = vpack.c.b16 %v118, %v117
    %v134 = vpack.c.b16 %v120, %v119
    %v135 = vpack.c.b16 %v122, %v121
    %v136 = vpack.c.b16 %v124, %v123
    %v137 = vpack.c.b16 %v126, %v125
    %v138 = vpack.c.b16 %v128, %v127
    %v139 = vpack.c.b16 %v130, %v129
    %v140 = vpack.c.b16 %v132, %v131
    %149 = vmatpush.bf16.msra.mxu0 %v140
    %150 = vmatpush.bf16.msra.mxu0 %v139
    %151 = vmatpush.bf16.msra.mxu0 %v138
    %152 = vmatpush.bf16.msra.mxu0 %v137
    %153 = vmatpush.bf16.msra.mxu0 %v136
    %154 = vmatpush.bf16.msra.mxu0 %v135
    %155 = vmatpush.bf16.msra.mxu0 %v134
    %156 = vmatpush.bf16.msra.mxu0 %v133
    %157 = vmatmul.bf16.gmra.mxu0 %v80
    %v158 = vpop.f32.mrf.mxu0
    %v159 = vadd.f32 %v99, %v158
    %v160 = vpop.f32.mrf.mxu0
    %v161 = vadd.f32 %v99, %v160
    %162 = vdwg.mxu0
    %163 = vmax.xlane.f32.xlu0 %v159
    %v164 = vpop.xlane.xlu0 %163
    %165 = vmax.xlane.f32.xlu0 %v161
    %v166 = vpop.xlane.xlu0 %165
    %v167 = vsub.f32 %v159, %v164
    %v168 = vsub.f32 %v161, %v166
    %v169 = vmul.f32 %v167, 1.442695
    %v170 = vpow.pop %v169
    %v171 = vmul.f32 %v168, 1.442695
    %v172 = vpow.pop %v171
    %173 = vadd.xlane.f32.xlu0 %v170
    %v174 = vpop.xlane.xlu0 %173
    %175 = vadd.xlane.f32.xlu0 %v172
    %v176 = vpop.xlane.xlu0 %175
    %v177 = vrcp.pop %v174
    %v178 = vmul.f32 %v174, %v177
    %v179 = vsub.f32 1.0, %v178
    %v180 = vmul.f32 %v177, %v179
    %v181 = vadd.f32 %v177, %v180
    %vm182 = vweird.f32 %v174
    %vm183 = vweird.f32 %v177
    %vm184 = vmor %vm182, %vm183
    %v185 = vsel %vm184, %v177, %v181
    %v186 = vand.u32 2147483647, %v174
    %vm187 = vcmp.eq.f32.partialorder %v186, 8.507059e+37
    %v188 = vand.u32 %v174, 2147483648
    %v189 = vor.u32 1.1754944e-38, %v188
    %v190 = vsel %vm187, %v189, %v185
    %v191 = vrcp.pop %v176
    %v192 = vmul.f32 %v176, %v191
    %v193 = vsub.f32 1.0, %v192
    %v194 = vmul.f32 %v191, %v193
    %v195 = vadd.f32 %v191, %v194
    %vm196 = vweird.f32 %v176
    %vm197 = vweird.f32 %v191
    %vm198 = vmor %vm196, %vm197
    %v199 = vsel %vm198, %v191, %v195
    %v200 = vand.u32 2147483647, %v176
    %vm201 = vcmp.eq.f32.partialorder %v200, 8.507059e+37
    %v202 = vand.u32 %v176, 2147483648
    %v203 = vor.u32 1.1754944e-38, %v202
    %v204 = vsel %vm201, %v203, %v199
    %v205 = vmul.f32 %v170, %v190
    %v206 = vmul.f32 %v172, %v204
    %v207 = vpack.c.bf16 %v205, %v205
    %v208 = vpack.c.bf16 %v206, %v206
    %209 = vst [vmem:[%s5] sm:$0xf] %v207
    %210 = vst [vmem:[%s5 + $0x4] sm:$0xf] %v208
    // Predicated region
    $region26: #{gating_network.1} parent=1 // pred_check
      _
    $region27: #{gating_network.1} parent=1 // pred_check_branch
      %212 = sbr.rel (0) target = $region29
    $region28: #{gating_network.1} parent=1 // pred_region
      _
    $region29: #{gating_network.1} parent=1 // pred_fallthru
      _
    // Predicated region
    $region30: #{gating_network.1} parent=1 // pred_check
      _
    $region31: #{gating_network.1} parent=1 // pred_check_branch
      %214 = sbr.rel (0) target = $region33
    $region32: #{gating_network.1} parent=1 // pred_region
      _
    $region33: #{gating_network.1} parent=1 // pred_fallthru
      _
    %215 = vsyncpa [#allocation3], 1

</llo_original>
